<compile_context>
chip_gen: v7x
topology: tpu7x:2x2x1
jax: 0.10.0
libtpu: 0.0.40
codegen_flags: <defaults>
</compile_context>

<pallas_src>
import functools

import jax
import jax.numpy as jnp
from jax.experimental import pallas as pl
from jax.experimental.pallas import tpu as pltpu


def _round_up(x, m):
    return ((x + m - 1) // m) * m


# ----------------------------------------------------------------------------
# Kernels
# ----------------------------------------------------------------------------

def ffn_kernel_inplace(x_ref, w1_ref, b1_ref, w2_ref, b2_ref, o_ref):
    """f32 output: accumulate straight into the resident output tile."""
    k = pl.program_id(1)

    @pl.when(k == 0)
    def _():
        o_ref[...] = jnp.broadcast_to(b2_ref[...], o_ref.shape).astype(o_ref.dtype)

    h = jnp.dot(x_ref[...], w1_ref[...], preferred_element_type=jnp.float32)
    h = jnp.maximum(h + b1_ref[...], 0.0)          # (1, tk) bias broadcasts
    o_ref[...] += jnp.dot(h.astype(w2_ref.dtype), w2_ref[...],
                          preferred_element_type=jnp.float32)


def ffn_kernel_acc(x_ref, w1_ref, b1_ref, w2_ref, b2_ref, o_ref, acc_ref):
    """Non-f32 output (e.g. bf16): accumulate in an f32 VMEM scratch."""
    k = pl.program_id(1)

    @pl.when(k == 0)
    def _():
        acc_ref[...] = jnp.broadcast_to(b2_ref[...].astype(jnp.float32),
                                        acc_ref.shape)

    h = jnp.dot(x_ref[...], w1_ref[...], preferred_element_type=jnp.float32)
    h = jnp.maximum(h + b1_ref[...], 0.0)
    acc_ref[...] += jnp.dot(h.astype(w2_ref.dtype), w2_ref[...],
                            preferred_element_type=jnp.float32)

    @pl.when(k == pl.num_programs(1) - 1)
    def _():
        o_ref[...] = acc_ref[...].astype(o_ref.dtype)


# ----------------------------------------------------------------------------
# Generation-aware configuration
# ----------------------------------------------------------------------------

_TILE_CONFIG = {
    # generation: (block_rows, block_ff, vmem_limit_bytes)
    "v7x": (512, 512, 56 * 1024 * 1024),     # 64 MiB physical -> leave headroom
    "v6e": (1024, 1024, 100 * 1024 * 1024),  # 128 MiB physical
    "v5e": (512, 1024, 100 * 1024 * 1024),   # 128 MiB physical
    "unknown": (256, 512, None),             # conservative default
}


def _tpu_generation():
    try:
        kind = jax.devices()[0].device_kind.lower()
    except Exception:
        return "unknown"
    if "7x" in kind or "v7" in kind:
        return "v7x"
    if "v6" in kind:
        return "v6e"
    if "v5" in kind:
        return "v5e"
    return "unknown"


def _pick_block_ff(d_ff, target):
    """Largest 128-multiple <= target dividing d_ff (avoids per-call weight pad)."""
    if d_ff <= target:
        return d_ff
    c = (target // 128) * 128
    while c >= 128:
        if d_ff % c == 0:
            return c
        c -= 128
    return target  # fall back; wrapper pads (see TODO below)


# ----------------------------------------------------------------------------
# pallas_call wrapper
# ----------------------------------------------------------------------------

@functools.partial(
    jax.jit,
    static_argnames=("block_rows", "block_ff", "vmem_limit", "core_parallel"))
def _ffn_impl(x2d, w1, b1, w2, b2, *, block_rows, block_ff, vmem_limit,
              core_parallel):
    n, d_model = x2d.shape
    d_ff = w1.shape[-1]

    n_pad = _round_up(n, block_rows)
    d_ff_pad = _round_up(d_ff, block_ff)

    # Zero padding is exact: relu(0 + 0) = 0 contributes nothing, and padded
    # rows are sliced off below.
    if n_pad != n:
        x2d = jnp.pad(x2d, ((0, n_pad - n), (0, 0)))
    if d_ff_pad != d_ff:
        # TODO(synk): hoist this one-time weight padding to parameter-init time
        # in production; _pick_block_ff normally makes this branch dead.
        w1 = jnp.pad(w1, ((0, 0), (0, d_ff_pad - d_ff)))
        b1 = jnp.pad(b1, ((0, d_ff_pad - d_ff),))
        w2 = jnp.pad(w2, ((0, d_ff_pad - d_ff), (0, 0)))

    b1_2d = b1.reshape(1, d_ff_pad)
    b2_2d = b2.reshape(1, d_model)

    num_row_tiles = n_pad // block_rows
    grid = (num_row_tiles, d_ff_pad // block_ff)

    out_is_f32 = x2d.dtype == jnp.float32
    kernel = ffn_kernel_inplace if out_is_f32 else ffn_kernel_acc
    scratch = [] if out_is_f32 else [pltpu.VMEM((block_rows, d_model),
                                                jnp.float32)]

    w_item = jnp.dtype(w1.dtype).itemsize
    x_item = jnp.dtype(x2d.dtype).itemsize
    cost = pl.CostEstimate(
        flops=int(4 * n_pad * d_model * d_ff_pad),
        transcendentals=0,
        bytes_accessed=int(
            n_pad * d_model * x_item * 2                            # x in, y out
            + num_row_tiles * 2 * d_model * d_ff_pad * w_item       # W1+W2 / row tile
            + num_row_tiles * (d_ff_pad + d_model) * w_item),       # biases / row tile
    )

    row_sem = pltpu.CORE_PARALLEL if core_parallel else pltpu.PARALLEL

    # TODO(synk): if still DMA-bound at row-tile boundaries on v5e/v6e, add
    # pipeline_mode=pl.Buffered(3) to the W1/W2 BlockSpecs (not on v7x).
    out = pl.pallas_call(
        kernel,
        out_shape=jax.ShapeDtypeStruct((n_pad, d_model), x2d.dtype),
        grid_spec=pltpu.PrefetchScalarGridSpec(
            num_scalar_prefetch=0,
            grid=grid,
            in_specs=[
                # activation row tile: resident across the d_ff reduction axis
                pl.BlockSpec((block_rows, d_model), lambda i, k: (i, 0)),
                # streamed weight / bias chunks over d_ff
                pl.BlockSpec((d_model, block_ff), lambda i, k: (0, k)),
                pl.BlockSpec((1, block_ff), lambda i, k: (0, k)),
                pl.BlockSpec((block_ff, d_model), lambda i, k: (k, 0)),
                pl.BlockSpec((1, d_model), lambda i, k: (0, 0)),
            ],
            # output tile resident across the reduction axis
            out_specs=pl.BlockSpec((block_rows, d_model), lambda i, k: (i, 0)),
            scratch_shapes=scratch,
        ),
        compiler_params=pltpu.CompilerParams(
            dimension_semantics=(row_sem, pltpu.ARBITRARY),
            vmem_limit_bytes=vmem_limit,
        ),
        cost_estimate=cost,
    )(x2d, w1, b1_2d, w2, b2_2d)

    return out[:n]


def feed_forward(x, w1, b1, w2, b2, *, block_rows=None, block_ff=None):
    """x: (..., d_model) -> (..., d_model), matching FeedForward.forward."""
    orig_shape = x.shape
    d_model = orig_shape[-1]
    d_ff = w1.shape[-1]

    x2d = x.reshape(-1, d_model)
    n = x2d.shape[0]

    gen = _tpu_generation()
    rows_default, ff_default, vmem_limit = _TILE_CONFIG[gen]
    if block_rows is None:
        block_rows = rows_default
    if block_ff is None:
        block_ff = ff_default

    # bf16 sublane packing prefers row tiles that are multiples of 16.
    row_align = 16 if jnp.dtype(x.dtype).itemsize < 4 else 8
    block_rows = max(row_align, min(block_rows, _round_up(n, row_align)))
    block_rows = _round_up(block_rows, row_align)

    # On v7x keep both TensorCores busy: split into >= 2 row tiles if possible.
    if gen == "v7x" and n > row_align and _round_up(n, row_align) <= block_rows:
        half = _round_up(-(-n // 2), row_align)
        if half >= row_align:
            block_rows = half

    block_ff = _pick_block_ff(d_ff, block_ff)

    n_pad = _round_up(n, block_rows)
    num_row_tiles = n_pad // block_rows
    core_parallel = (gen == "v7x" and num_row_tiles >= 2)

    # TODO(synk): for production keep d_model a multiple of 128 (lane-dense
    # stores) and run activations/weights in bf16 (biggest single lever).
    out = _ffn_impl(x2d, w1, b1, w2, b2,
                    block_rows=int(block_rows), block_ff=int(block_ff),
                    vmem_limit=vmem_limit, core_parallel=bool(core_parallel))
    return out.reshape(orig_shape)


def init_params(key, d_model, d_ff, dtype=jnp.float32):
    """Deterministic init mirroring nn.Linear's uniform(-1/sqrt(fan_in), +)."""
    k1, k2, k3, k4 = jax.random.split(key, 4)
    lim1 = 1.0 / (d_model ** 0.5)
    lim2 = 1.0 / (d_ff ** 0.5)
    # Stored already transposed relative to PyTorch (out,in) -> (in,out).
    w1 = jax.random.uniform(k1, (d_model, d_ff), dtype, -lim1, lim1)
    b1 = jax.random.uniform(k2, (d_ff,), dtype, -lim1, lim1)
    w2 = jax.random.uniform(k3, (d_ff, d_model), dtype, -lim2, lim2)
    b2 = jax.random.uniform(k4, (d_model,), dtype, -lim2, lim2)
    return w1, b1, w2, b2


if __name__ == "__main__":
    key = jax.random.PRNGKey(0)
    batch, seq, d_model, d_ff = 2, 8, 32, 64

    kx, kp = jax.random.split(key)
    x = jax.random.normal(kx, (batch, seq, d_model), jnp.float32)
    w1, b1, w2, b2 = init_params(kp, d_model, d_ff, jnp.float32)

    # f32 path (direct accumulation into the output tile)
    y = jax.block_until_ready(feed_forward(x, w1, b1, w2, b2))
    ref = jnp.maximum(x @ w1 + b1, 0.0) @ w2 + b2
    assert y.shape == x.shape
    assert jnp.allclose(y, ref, atol=1e-5, rtol=1e-5), \
        float(jnp.max(jnp.abs(y - ref)))

    # bf16 path (exercises the f32-scratch accumulator variant)
    xb = x.astype(jnp.bfloat16)
    w1b, b1b, w2b, b2b = (t.astype(jnp.bfloat16) for t in (w1, b1, w2, b2))
    yb = jax.block_until_ready(feed_forward(xb, w1b, b1b, w2b, b2b))
    refb = (jnp.maximum(xb.astype(jnp.float32) @ w1b.astype(jnp.float32)
                        + b1b.astype(jnp.float32), 0.0)
            @ w2b.astype(jnp.float32) + b2b.astype(jnp.float32))
    assert jnp.allclose(yb.astype(jnp.float32), refb, atol=3e-2, rtol=3e-2)

    print("KERNEL_OK")
</pallas_src>

<mosaic_0001>
module attributes {stable_mosaic.version = 11 : i64} {
  func.func @ffn_kernel_inplace(%arg0: i32, %arg1: i32, %arg2: memref<16x32xf32, #tpu.memory_space<vmem>>, %arg3: memref<32x64xf32, #tpu.memory_space<vmem>>, %arg4: memref<1x64xf32, #tpu.memory_space<vmem>>, %arg5: memref<64x32xf32, #tpu.memory_space<vmem>>, %arg6: memref<1x32xf32, #tpu.memory_space<vmem>>, %arg7: memref<16x32xf32, #tpu.memory_space<vmem>>) attributes {dimension_semantics = [#tpu.dimension_semantics<parallel>, #tpu.dimension_semantics<arbitrary>], iteration_bounds = array<i64: 1, 1>, scalar_prefetch = 0 : i64, scratch_operands = 0 : i64, tpu.core_type = #tpu.core_type<tc>, window_params = [{transform_indices = @transform_0, window_bounds = array<i64: 16, 32>}, {transform_indices = @transform_1, window_bounds = array<i64: 32, 64>}, {transform_indices = @transform_2, window_bounds = array<i64: 1, 64>}, {transform_indices = @transform_3, window_bounds = array<i64: 64, 32>}, {pipeline_mode = #tpu.pipeline_mode<synchronous>, transform_indices = @transform_4, window_bounds = array<i64: 1, 32>}, {transform_indices = @transform_5, window_bounds = array<i64: 16, 32>}]} {
    %c0_i32 = arith.constant 0 : i32
    %0 = arith.cmpi eq, %arg1, %c0_i32 : i32
    %1 = arith.extui %0 : i1 to i32
    %c0_i32_0 = arith.constant 0 : i32
    %2 = arith.cmpi ne, %1, %c0_i32_0 : i32
    scf.if %2 {
      %c0_14 = arith.constant 0 : index
      %c0_15 = arith.constant 0 : index
      %16 = vector.load %arg6[%c0_14, %c0_15] : memref<1x32xf32, #tpu.memory_space<vmem>>, vector<1x32xf32>
      %17 = vector.shape_cast %16 : vector<1x32xf32> to vector<1x32xf32>
      %18 = vector.broadcast %17 : vector<1x32xf32> to vector<16x32xf32>
      %c0_16 = arith.constant 0 : index
      %c0_17 = arith.constant 0 : index
      %19 = vector.load %arg7[%c0_16, %c0_17] : memref<16x32xf32, #tpu.memory_space<vmem>>, vector<16x32xf32>
      tpu.vector_store %arg7[%c0_16, %c0_17], %18 {strides = array<i32>} : memref<16x32xf32, #tpu.memory_space<vmem>>, vector<16x32xf32>,
    } else {
    }
    %c0 = arith.constant 0 : index
    %c0_1 = arith.constant 0 : index
    %3 = vector.load %arg2[%c0, %c0_1] : memref<16x32xf32, #tpu.memory_space<vmem>>, vector<16x32xf32>
    %c0_2 = arith.constant 0 : index
    %c0_3 = arith.constant 0 : index
    %4 = vector.load %arg3[%c0_2, %c0_3] : memref<32x64xf32, #tpu.memory_space<vmem>>, vector<32x64xf32>
    %cst = arith.constant dense<0.000000e+00> : vector<16x64xf32>
    %5 = tpu.matmul %3, %4, %cst {dimension_numbers = #tpu.dot_dimension_numbers<[1], [0], [0], [1], [0, 0, 1, 1], [], []>} : vector<16x32xf32>, vector<32x64xf32>, vector<16x64xf32> -> vector<16x64xf32>
    %c0_4 = arith.constant 0 : index
    %c0_5 = arith.constant 0 : index
    %6 = vector.load %arg4[%c0_4, %c0_5] : memref<1x64xf32, #tpu.memory_space<vmem>>, vector<1x64xf32>
    %7 = vector.broadcast %6 : vector<1x64xf32> to vector<16x64xf32>
    %8 = arith.addf %5, %7 : vector<16x64xf32>
    %cst_6 = arith.constant 0.000000e+00 : f32
    %9 = vector.broadcast %cst_6 : f32 to vector<16x64xf32>
    %10 = arith.maximumf %8, %9 : vector<16x64xf32>
    %c0_7 = arith.constant 0 : index
    %c0_8 = arith.constant 0 : index
    %11 = vector.load %arg7[%c0_7, %c0_8] : memref<16x32xf32, #tpu.memory_space<vmem>>, vector<16x32xf32>
    %c0_9 = arith.constant 0 : index
    %c0_10 = arith.constant 0 : index
    %12 = vector.load %arg5[%c0_9, %c0_10] : memref<64x32xf32, #tpu.memory_space<vmem>>, vector<64x32xf32>
    %cst_11 = arith.constant dense<0.000000e+00> : vector<16x32xf32>
    %13 = tpu.matmul %10, %12, %cst_11 {dimension_numbers = #tpu.dot_dimension_numbers<[1], [0], [0], [1], [0, 0, 1, 1], [], []>} : vector<16x64xf32>, vector<64x32xf32>, vector<16x32xf32> -> vector<16x32xf32>
    %14 = arith.addf %11, %13 : vector<16x32xf32>
    %c0_12 = arith.constant 0 : index
    %c0_13 = arith.constant 0 : index
    %15 = vector.load %arg7[%c0_12, %c0_13] : memref<16x32xf32, #tpu.memory_space<vmem>>, vector<16x32xf32>
    tpu.vector_store %arg7[%c0_12, %c0_13], %14 {strides = array<i32>} : memref<16x32xf32, #tpu.memory_space<vmem>>, vector<16x32xf32>,
    return
  }
  func.func @transform_0(%arg0: i32, %arg1: i32) -> (i32, i32) {
    %c0_i32 = arith.constant 0 : i32
    %c0_i32_0 = arith.constant 0 : i32
    return %arg0, %c0_i32 : i32, i32
  }
  func.func @transform_1(%arg0: i32, %arg1: i32) -> (i32, i32) {
    %c0_i32 = arith.constant 0 : i32
    %c0_i32_0 = arith.constant 0 : i32
    return %c0_i32, %arg1 : i32, i32
  }
  func.func @transform_2(%arg0: i32, %arg1: i32) -> (i32, i32) {
    %c0_i32 = arith.constant 0 : i32
    %c0_i32_0 = arith.constant 0 : i32
    return %c0_i32, %arg1 : i32, i32
  }
  func.func @transform_3(%arg0: i32, %arg1: i32) -> (i32, i32) {
    %c0_i32 = arith.constant 0 : i32
    %c0_i32_0 = arith.constant 0 : i32
    return %arg1, %c0_i32 : i32, i32
  }
  func.func @transform_4(%arg0: i32, %arg1: i32) -> (i32, i32) {
    %c0_i32 = arith.constant 0 : i32
    %c0_i32_0 = arith.constant 0 : i32
    %c0_i32_1 = arith.constant 0 : i32
    return %c0_i32, %c0_i32_0 : i32, i32
  }
  func.func @transform_5(%arg0: i32, %arg1: i32) -> (i32, i32) {
    %c0_i32 = arith.constant 0 : i32
    %c0_i32_0 = arith.constant 0 : i32
    return %arg0, %c0_i32 : i32, i32
  }
}

</mosaic_0001>

<llo_original>
// kernel: _ffn_impl.1
$region0: #{_ffn_impl.1}
  #allocation0 [shape = 'u32[]', space=smem, size = 0x4, offset = 0x4, fixed_abs, tag = 'smem constant byte address 0x4 - core index']
  #allocation1 [shape = 'u32[144,128]{1,0:T(1,128)}', space=vmem, size = 0x12000, scoped, tag = 'internal scratch']
  %s0 = inlined_call_operand.vmem [shape: f32[16,32], index: 0, kind: input, shape index: {}]
  %s1 = inlined_call_operand.vmem [shape: f32[32,64], index: 1, kind: input, shape index: {}]
  %s2 = inlined_call_operand.vmem [shape: f32[1,64], index: 2, kind: input, shape index: {}]
  %s3 = inlined_call_operand.vmem [shape: f32[64,32], index: 3, kind: input, shape index: {}]
  %s4 = inlined_call_operand.vmem [shape: f32[1,32], index: 4, kind: input, shape index: {}]
  %s5 = inlined_call_operand.hbm [shape: f32[16,32], index: 5, kind: output, shape index: {}]
  %s6 = sld [smem:[#allocation0]]
  $region34: #{_ffn_impl.1} parent=0
    _
  %s8 = ssub.s32 1, %s6
  %s9 = scalar_select 0, %s8, %s6
  $region1: #{_ffn_impl.1} parent=0
    #allocation2 [shape = 'u8[8192]{0}', space=vmem, size = 0x2000, scoped, tag = 'output window, operand 0, single buffered']
    #allocation3 [shape = 's32[1]{0}', space=sflag, size = 0x4, scoped, tag = 'scoped memory for _ffn_impl.1']
    %10 = vsyncpa [#allocation3], 0
    // Predicated region
    $region2: #{_ffn_impl.1} parent=1 // pred_check
      _
    $region3: #{_ffn_impl.1} parent=1 // pred_check_branch
      %12 = sbr.rel (0) target = $region5
    $region4: #{_ffn_impl.1} parent=1 // pred_region
      _
    $region5: #{_ffn_impl.1} parent=1 // pred_fallthru
      _
    // Predicated region
    $region6: #{_ffn_impl.1} parent=1 // pred_check
      _
    $region7: #{_ffn_impl.1} parent=1 // pred_check_branch
      %14 = sbr.rel (0) target = $region9
    $region8: #{_ffn_impl.1} parent=1 // pred_region
      _
    $region9: #{_ffn_impl.1} parent=1 // pred_fallthru
      _
    // Predicated region
    $region10: #{_ffn_impl.1} parent=1 // pred_check
      _
    $region11: #{_ffn_impl.1} parent=1 // pred_check_branch
      %16 = sbr.rel (0) target = $region13
    $region12: #{_ffn_impl.1} parent=1 // pred_region
      _
    $region13: #{_ffn_impl.1} parent=1 // pred_fallthru
      _
    // Predicated region
    $region14: #{_ffn_impl.1} parent=1 // pred_check
      _
    $region15: #{_ffn_impl.1} parent=1 // pred_check_branch
      %18 = sbr.rel (0) target = $region17
    $region16: #{_ffn_impl.1} parent=1 // pred_region
      _
    $region17: #{_ffn_impl.1} parent=1 // pred_fallthru
      _
    // Predicated region
    $region18: #{_ffn_impl.1} parent=1 // pred_check
      _
    $region19: #{_ffn_impl.1} parent=1 // pred_check_branch
      %20 = sbr.rel (0) target = $region21
    $region20: #{_ffn_impl.1} parent=1 // pred_region
      _
    $region21: #{_ffn_impl.1} parent=1 // pred_fallthru
      _
    %p21 = scmp.eq.s32.totalorder 0, 0
    // Predicated region
    $region22: #{_ffn_impl.1} parent=1 // pred_check
      %p22 = pneg %p21
    $region23: #{_ffn_impl.1} parent=1 // pred_check_branch
      %24 = sbr.rel (%p22) target = $region25
    $region24: #{_ffn_impl.1} parent=1 // pred_region
      %v25 = vld [vmem:[%s4] sm:$0x1]
      %v27 = vlaneseq
      %v28 = vshrl.u32 %v27, 7
      %v29 = vsub.s32 0, %v28
      %v30 = vrot.slane %v25, %v29
      %vm32 = vcmask 261120
      %33 = vst.msk [vmem:[#allocation2] sm:$0xff] %vm32, %v30
      %34 = vst.msk [vmem:[#allocation2 + $0x8] sm:$0xff] %vm32, %v30
    $region25: #{_ffn_impl.1} parent=1 // pred_fallthru
      _
    %v35 = vld [vmem:[%s0] sm:$0xff]
    %v36 = vld [vmem:[%s0 + $0x8] sm:$0xff]
    %v37 = vld [vmem:[%s1] sm:$0xff]
    %v38 = vld [vmem:[%s1 + $0x8] sm:$0xff]
    %v39 = vld [vmem:[%s1 + $0x10] sm:$0xff]
    %v40 = vld [vmem:[%s1 + $0x18] sm:$0xff]
    %v41 = vld [vmem:[%s2] sm:$0x1]
    %v43 = vlaneseq
    %v44 = vshrl.u32 %v43, 7
    %v45 = vsub.s32 0, %v44
    %v46 = vrot.slane %v41, %v45
    %vm48 = vcmask 261120
    %v50 = vsel %vm48, %v35, 0
    %v53 = vsel %vm48, %v36, 0
    %55 = vmatprep.subr.mxu0 0.0
    %56 = vmatpush1.msra.mxu0 %v37
    %57 = vmatprep.subr.mxu0 0.0
    %58 = vmatpush1.msra.mxu0 %v38
    %59 = vmatprep.subr.mxu0 0.0
    %60 = vmatpush1.msra.mxu0 %v39
    %61 = vmatprep.subr.mxu0 0.0
    %62 = vmatpush1.msra.mxu0 %v40
    %63 = vmatprep.subr.mxu0 0.0
    %64 = vmatpush1.msra.mxu0 0.0
    %65 = vmatprep.subr.mxu0 0.0
    %66 = vmatpush1.msra.mxu0 0.0
    %67 = vmatprep.subr.mxu0 0.0
    %68 = vmatpush1.msra.mxu0 0.0
    %69 = vmatprep.subr.mxu0 0.0
    %70 = vmatpush1.msra.mxu0 0.0
    %71 = vmatprep.subr.mxu0 0.0
    %72 = vmatpush1.msra.mxu0 0.0
    %73 = vmatprep.subr.mxu0 0.0
    %74 = vmatpush1.msra.mxu0 0.0
    %75 = vmatprep.subr.mxu0 0.0
    %76 = vmatpush1.msra.mxu0 0.0
    %77 = vmatprep.subr.mxu0 0.0
    %78 = vmatpush1.msra.mxu0 0.0
    %79 = vmatprep.subr.mxu0 0.0
    %80 = vmatpush1.msra.mxu0 0.0
    %81 = vmatprep.subr.mxu0 0.0
    %82 = vmatpush1.msra.mxu0 0.0
    %83 = vmatprep.subr.mxu0 0.0
    %84 = vmatpush1.msra.mxu0 0.0
    %85 = vmatprep.subr.mxu0 0.0
    %86 = vmatpush1.msra.mxu0 0.0
    %87 = vmatprep.subr.mxu0 0.0
    %88 = vmatpush1.msra.mxu0 0.0
    %89 = vmatprep.subr.mxu0 0.0
    %90 = vmatpush1.msra.mxu0 0.0
    %91 = vmatprep.subr.mxu0 0.0
    %92 = vmatpush1.msra.mxu0 0.0
    %93 = vmatprep.subr.mxu0 0.0
    %94 = vmatpush1.msra.mxu0 0.0
    %95 = vmatprep.subr.mxu0 0.0
    %96 = vmatpush1.msra.mxu0 0.0
    %97 = vmatprep.subr.mxu0 0.0
    %98 = vmatpush1.msra.mxu0 0.0
    %99 = vmatprep.subr.mxu0 0.0
    %100 = vmatpush1.msra.mxu0 0.0
    %101 = vmatprep.subr.mxu0 0.0
    %102 = vmatpush1.msra.mxu0 0.0
    %103 = vmatprep.subr.mxu0 0.0
    %104 = vmatpush1.msra.mxu0 0.0
    %105 = vmatprep.subr.mxu0 0.0
    %106 = vmatpush1.msra.mxu0 0.0
    %107 = vmatprep.subr.mxu0 0.0
    %108 = vmatpush1.msra.mxu0 0.0
    %109 = vmatprep.subr.mxu0 0.0
    %110 = vmatpush1.msra.mxu0 0.0
    %111 = vmatprep.subr.mxu0 0.0
    %112 = vmatpush1.msra.mxu0 0.0
    %113 = vmatprep.subr.mxu0 0.0
    %114 = vmatpush1.msra.mxu0 0.0
    %115 = vmatprep.subr.mxu0 0.0
    %116 = vmatpush1.msra.mxu0 0.0
    %117 = vmatprep.subr.mxu0 0.0
    %118 = vmatpush1.msra.mxu0 0.0
    %119 = vmatprep.mubr.f32.mxu0 0.0
    %120 = vmatmul.mubr.f32.gmra.mrb[0].mxu0 %v50
    %v121 = vpop.f32.mrb[0].mxu0
    %v122 = vadd.f32 %v46, %v121
    %v123 = vpop.f32.mrb[0].mxu0
    %124 = vmatprep.mubr.f32.mxu0 0.0
    %125 = vmatmul.mubr.f32.gmra.mrb[0].mxu0 %v53
    %v126 = vpop.f32.mrb[0].mxu0
    %v127 = vadd.f32 %v46, %v126
    %v128 = vpop.f32.mrb[0].mxu0
    %129 = vdwg.mxu0
    %v130 = vmax.f32 %v122, 0.0
    %v131 = vmax.f32 %v127, 0.0
    %v132 = vld [vmem:[#allocation2] sm:$0xff]
    %v133 = vld [vmem:[#allocation2 + $0x8] sm:$0xff]
    %v134 = vld [vmem:[%s3] sm:$0xff]
    %v135 = vld [vmem:[%s3 + $0x8] sm:$0xff]
    %v136 = vld [vmem:[%s3 + $0x10] sm:$0xff]
    %v137 = vld [vmem:[%s3 + $0x18] sm:$0xff]
    %v138 = vld [vmem:[%s3 + $0x20] sm:$0xff]
    %v139 = vld [vmem:[%s3 + $0x28] sm:$0xff]
    %v140 = vld [vmem:[%s3 + $0x30] sm:$0xff]
    %v141 = vld [vmem:[%s3 + $0x38] sm:$0xff]
    %vm142 = vcmask 523264
    %v144 = vsel %vm142, %v130, 0
    %v147 = vsel %vm142, %v131, 0
    %149 = vmatprep.subr.mxu0 0.0
    %150 = vmatpush1.msra.mxu0 %v134
    %151 = vmatprep.subr.mxu0 0.0
    %152 = vmatpush1.msra.mxu0 %v135
    %153 = vmatprep.subr.mxu0 0.0
    %154 = vmatpush1.msra.mxu0 %v136
    %155 = vmatprep.subr.mxu0 0.0
    %156 = vmatpush1.msra.mxu0 %v137
    %157 = vmatprep.subr.mxu0 0.0
    %158 = vmatpush1.msra.mxu0 %v138
    %159 = vmatprep.subr.mxu0 0.0
    %160 = vmatpush1.msra.mxu0 %v139
    %161 = vmatprep.subr.mxu0 0.0
    %162 = vmatpush1.msra.mxu0 %v140
    %163 = vmatprep.subr.mxu0 0.0
    %164 = vmatpush1.msra.mxu0 %v141
    %165 = vmatprep.subr.mxu0 0.0
    %166 = vmatpush1.msra.mxu0 0.0
    %167 = vmatprep.subr.mxu0 0.0
    %168 = vmatpush1.msra.mxu0 0.0
    %169 = vmatprep.subr.mxu0 0.0
    %170 = vmatpush1.msra.mxu0 0.0
    %171 = vmatprep.subr.mxu0 0.0
    %172 = vmatpush1.msra.mxu0 0.0
    %173 = vmatprep.subr.mxu0 0.0
    %174 = vmatpush1.msra.mxu0 0.0
    %175 = vmatprep.subr.mxu0 0.0
    %176 = vmatpush1.msra.mxu0 0.0
    %177 = vmatprep.subr.mxu0 0.0
    %178 = vmatpush1.msra.mxu0 0.0
    %179 = vmatprep.subr.mxu0 0.0
    %180 = vmatpush1.msra.mxu0 0.0
    %181 = vmatprep.subr.mxu0 0.0
    %182 = vmatpush1.msra.mxu0 0.0
    %183 = vmatprep.subr.mxu0 0.0
    %184 = vmatpush1.msra.mxu0 0.0
    %185 = vmatprep.subr.mxu0 0.0
    %186 = vmatpush1.msra.mxu0 0.0
    %187 = vmatprep.subr.mxu0 0.0
    %188 = vmatpush1.msra.mxu0 0.0
    %189 = vmatprep.subr.mxu0 0.0
    %190 = vmatpush1.msra.mxu0 0.0
    %191 = vmatprep.subr.mxu0 0.0
    %192 = vmatpush1.msra.mxu0 0.0
    %193 = vmatprep.subr.mxu0 0.0
    %194 = vmatpush1.msra.mxu0 0.0
    %195 = vmatprep.subr.mxu0 0.0
    %196 = vmatpush1.msra.mxu0 0.0
    %197 = vmatprep.subr.mxu0 0.0
    %198 = vmatpush1.msra.mxu0 0.0
    %199 = vmatprep.subr.mxu0 0.0
    %200 = vmatpush1.msra.mxu0 0.0
    %201 = vmatprep.subr.mxu0 0.0
    %202 = vmatpush1.msra.mxu0 0.0
    %203 = vmatprep.subr.mxu0 0.0
    %204 = vmatpush1.msra.mxu0 0.0
    %205 = vmatprep.subr.mxu0 0.0
    %206 = vmatpush1.msra.mxu0 0.0
    %207 = vmatprep.subr.mxu0 0.0
    %208 = vmatpush1.msra.mxu0 0.0
    %209 = vmatprep.subr.mxu0 0.0
    %210 = vmatpush1.msra.mxu0 0.0
    %211 = vmatprep.subr.mxu0 0.0
    %212 = vmatpush1.msra.mxu0 0.0
    %213 = vmatprep.mubr.f32.mxu0 0.0
    %214 = vmatmul.mubr.f32.gmra.mrb[0].mxu0 %v144
    %v215 = vpop.f32.mrb[0].mxu0
    %v216 = vadd.f32 0.0, %v215
    %v217 = vpop.f32.mrb[0].mxu0
    %218 = vmatprep.mubr.f32.mxu0 0.0
    %219 = vmatmul.mubr.f32.gmra.mrb[0].mxu0 %v147
    %v220 = vpop.f32.mrb[0].mxu0
    %v221 = vadd.f32 0.0, %v220
    %v222 = vpop.f32.mrb[0].mxu0
    %223 = vdwg.mxu0
    %v224 = vadd.f32 %v132, %v216
    %v225 = vadd.f32 %v133, %v221
    %226 = vst.msk [vmem:[#allocation2] sm:$0xff] %vm48, %v224
    %227 = vst.msk [vmem:[#allocation2 + $0x8] sm:$0xff] %vm48, %v225
    // Predicated region
    $region26: #{_ffn_impl.1} parent=1 // pred_check
      _
    $region27: #{_ffn_impl.1} parent=1 // pred_check_branch
      %229 = sbr.rel (0) target = $region29
    $region28: #{_ffn_impl.1} parent=1 // pred_region
      %s231 = ssub.s32 256, 256
      %232 = vsyncadd [#allocation3], %s231
      %s233 = sshll.u32 [#allocation2], 4
      %s234 = int_to_ptr.vmem [resolvable:$true] %s233
      %239 = dma.vmem_to_hbm [thread:$0]  %s234, 256, %s5, [#allocation3], 128, 128, 8
    $region29: #{_ffn_impl.1} parent=1 // pred_fallthru
      _
    // Predicated region
    $region30: #{_ffn_impl.1} parent=1 // pred_check
      _
    $region31: #{_ffn_impl.1} parent=1 // pred_check_branch
      %241 = sbr.rel (0) target = $region33
    $region32: #{_ffn_impl.1} parent=1 // pred_region
      %242 = dma.done [#allocation3], 256
    $region33: #{_ffn_impl.1} parent=1 // pred_fallthru
      _
    %243 = vsyncpa [#allocation3], 1

</llo_original>
